<compile_context>
chip_gen: v7x
topology: tpu7x:2x2x1
jax: 0.10.0
libtpu: 0.0.40
codegen_flags: <defaults>
</compile_context>

<pallas_src>
import functools

import jax
import jax.numpy as jnp
from jax import lax
from jax.experimental import pallas as pl
from jax.experimental.pallas import tpu as pltpu

_LANE = 128
_SUBLANE = 8
_MAX_BATCH_BLOCK = 512


def _round_up(x, mult):
    return ((x + mult - 1) // mult) * mult


def _cdiv(a, b):
    return -(-a // b)


def _batch_blocking(B):
    """Split B into nb ~equal 8-aligned blocks of at most _MAX_BATCH_BLOCK rows.

    Over-padding is bounded to < 8 rows per block (vs. up to ~2x with the old
    round_up(B, block_b) scheme, e.g. B=520 -> 1024).  For B > 512 the grid has
    >= 2 steps so both v7x TensorCores get work.
    Returns (B_pad, block_b) with B_pad = nb * block_b.
    """
    nb = _cdiv(B, _MAX_BATCH_BLOCK)
    block_b = _round_up(_cdiv(B, nb), _SUBLANE)
    return nb * block_b, block_b


# ----------------------------- fused Pallas kernel -----------------------------

def _make_fused_kernel(num_hidden):
    """Fused MLP: Linear+ReLU, (Linear+ReLU)^num_hidden, Linear+tanh-scale.

    Weights (w0/wh/wl) arrive in bf16; matmuls run bf16 x bf16 -> f32 on the
    MXU; bias add / ReLU / tanh / affine rescale run in f32 on the VPU/EUP.
    """
    if num_hidden > 0:
        def kernel(x_ref, w0_ref, b0_ref, wh_ref, bh_ref, wl_ref, bl_ref,
                   center_ref, half_ref, o_ref):
            x = jnp.maximum(
                jnp.dot(x_ref[...].astype(jnp.bfloat16), w0_ref[...],
                        preferred_element_type=jnp.float32) + b0_ref[...], 0.0)
            if num_hidden <= 4:
                for i in range(num_hidden):  # static unroll (shallow nets)
                    x = jnp.maximum(
                        jnp.dot(x.astype(jnp.bfloat16), wh_ref[i],
                                preferred_element_type=jnp.float32)
                        + bh_ref[i], 0.0)
            else:
                # Deep nets: fori_loop bounds vreg live ranges / VMEM temporaries.
                def body(i, acc):
                    return jnp.maximum(
                        jnp.dot(acc.astype(jnp.bfloat16), wh_ref[i],
                                preferred_element_type=jnp.float32)
                        + bh_ref[i], 0.0)
                x = lax.fori_loop(0, num_hidden, body, x)
            y = jnp.dot(x.astype(jnp.bfloat16), wl_ref[...],
                        preferred_element_type=jnp.float32) + bl_ref[...]
            o_ref[...] = center_ref[...] + half_ref[...] * jnp.tanh(y)
    else:
        def kernel(x_ref, w0_ref, b0_ref, wl_ref, bl_ref,
                   center_ref, half_ref, o_ref):
            x = jnp.maximum(
                jnp.dot(x_ref[...].astype(jnp.bfloat16), w0_ref[...],
                        preferred_element_type=jnp.float32) + b0_ref[...], 0.0)
            y = jnp.dot(x.astype(jnp.bfloat16), wl_ref[...],
                        preferred_element_type=jnp.float32) + bl_ref[...]
            o_ref[...] = center_ref[...] + half_ref[...] * jnp.tanh(y)
    return kernel


def _fused_forward(x, params, *, H, block_b):
    """One pallas_call computing the whole MLP forward on an (B_pad, n) input."""
    (w0, b0, wh, bh, wl, bl, center, half) = params
    B_pad, n = x.shape
    dim_p = w0.shape[1]
    m_p = wl.shape[1]
    num_hidden = H - 2
    grid = (B_pad // block_b,)

    batch_map = lambda i: (i, 0)
    const2 = lambda i: (0, 0)
    const3 = lambda i: (0, 0, 0)

    inputs = [x, w0, b0]
    in_specs = [pl.BlockSpec((block_b, n), batch_map),   # last dim == full dim
                pl.BlockSpec(w0.shape, const2),
                pl.BlockSpec(b0.shape, const2)]
    if num_hidden > 0:
        inputs += [wh, bh]
        in_specs += [pl.BlockSpec(wh.shape, const3),
                     pl.BlockSpec(bh.shape, const3)]
    inputs += [wl, bl, center, half]
    in_specs += [pl.BlockSpec(wl.shape, const2),
                 pl.BlockSpec(bl.shape, const2),
                 pl.BlockSpec(center.shape, const2),
                 pl.BlockSpec(half.shape, const2)]

    flops = 2 * B_pad * (n * dim_p + num_hidden * dim_p * dim_p + dim_p * m_p)
    bytes_accessed = (sum(int(a.size) * int(a.dtype.itemsize) for a in inputs)
                      + int(B_pad) * int(m_p) * 4)
    cost = pl.CostEstimate(flops=int(flops),
                           transcendentals=int(B_pad) * int(m_p),
                           bytes_accessed=int(bytes_accessed))

    # VMEM budget sized from the actual resident weight stack (+ double-buffered
    # streamed blocks) with headroom: keeps the generic class inside v7x's
    # 64 MiB physical / v5e's 16 MiB default scoped limit if dim/H ever grow.
    resident_bytes = sum(int(a.size) * int(a.dtype.itemsize) for a in inputs[1:])
    streamed_bytes = 2 * (block_b * n * 4 + block_b * m_p * 4)
    vmem_limit = int(min(max(3 * (resident_bytes + streamed_bytes) + (4 << 20),
                             32 << 20),
                         100 << 20))

    return pl.pallas_call(
        _make_fused_kernel(num_hidden),
        out_shape=jax.ShapeDtypeStruct((B_pad, m_p), jnp.float32),
        grid=grid,
        in_specs=in_specs,
        out_specs=pl.BlockSpec((block_b, m_p), batch_map),  # lane-dense f32 slab
        compiler_params=pltpu.CompilerParams(
            dimension_semantics=("parallel",),
            vmem_limit_bytes=vmem_limit),
        cost_estimate=cost,
    )(*inputs)


def _padded_forward(x_pad, params, *, H, m):
    """Jitted forward on a batch-padded (B_pad, n) state; returns (B_pad, m)."""
    B_pad = x_pad.shape[0]
    nb = _cdiv(B_pad, _MAX_BATCH_BLOCK)
    block_b = B_pad // nb            # consistent with _batch_blocking by construction
    out_pad = _fused_forward(x_pad, params, H=H, block_b=block_b)
    return out_pad[:, :m]


# --------------------------------- Actor ---------------------------------------

class Actor:
    """JAX/Pallas port of the PyTorch Actor MLP (single fused TPU kernel)."""

    def __init__(self, n, m, dim, H, action_max, action_min, key):
        assert H >= 2
        self.H = H
        self.n, self.m, self.dim = n, m, dim

        action_max = jnp.asarray(action_max, jnp.float32).reshape(-1)
        action_min = jnp.asarray(action_min, jnp.float32).reshape(-1)

        # Hidden/output dims zero-padded to the 128-lane width; the first-layer
        # input dim is left at n (state is fed unpadded, Mosaic pads K internally).
        dim_p = _round_up(dim, _LANE)
        m_p = _round_up(m, _LANE)
        self.dim_p, self.m_p = dim_p, m_p

        in_sizes = [n] + [dim] * (H - 1)
        out_sizes = [dim] * (H - 1) + [m]
        in_pad = [n] + [dim_p] * (H - 1)
        out_pad = [dim_p] * (H - 1) + [m_p]

        padded_ws, padded_bs = [], []
        self.ref_weights, self.ref_biases = [], []  # unpadded f32, for references
        for i in range(H):
            fan_in, fan_out = in_sizes[i], out_sizes[i]
            key, wk, bk = jax.random.split(key, 3)
            bound = 1.0 / (fan_in ** 0.5)
            # PyTorch nn.Linear default init: U(-1/sqrt(fan_in), 1/sqrt(fan_in))
            w_pt = jax.random.uniform(wk, (fan_out, fan_in), jnp.float32,
                                      minval=-bound, maxval=bound)
            b_pt = jax.random.uniform(bk, (fan_out,), jnp.float32,
                                      minval=-bound, maxval=bound)
            w_in_out = jnp.transpose(w_pt)                       # [in, out]
            self.ref_weights.append(w_in_out)
            self.ref_biases.append(b_pt.reshape(1, fan_out))
            w_padded = jnp.zeros((in_pad[i], out_pad[i]), jnp.float32)
            w_padded = w_padded.at[:fan_in, :fan_out].set(w_in_out)
            # Weights stored bf16 (MXU-native); biases stay f32.
            padded_ws.append(w_padded.astype(jnp.bfloat16))
            b_padded = jnp.zeros((1, out_pad[i]), jnp.float32)
            b_padded = b_padded.at[0, :fan_out].set(b_pt)
            padded_bs.append(b_padded)

        w0, b0 = padded_ws[0], padded_bs[0]
        wl, bl = padded_ws[-1], padded_bs[-1]
        if H > 2:
            wh = jnp.stack(padded_ws[1:-1], axis=0)   # [H-2, dim_p, dim_p] bf16
            bh = jnp.stack(padded_bs[1:-1], axis=0)   # [H-2, 1, dim_p]     f32
        else:
            wh = bh = None

        self.ref_center = ((action_max + action_min) / 2.0).reshape(1, -1)
        self.ref_half = ((action_max - action_min) / 2.0).reshape(1, -1)
        center = jnp.zeros((1, m_p), jnp.float32).at[0, :m].set(self.ref_center[0])
        half = jnp.zeros((1, m_p), jnp.float32).at[0, :m].set(self.ref_half[0])

        self.params = (w0, b0, wh, bh, wl, bl, center, half)
        # Single jit: cache key is the (bucketed) padded input shape, so varying
        # rollout batch sizes that bucket to the same B_pad share one compile.
        self._forward = jax.jit(functools.partial(_padded_forward, H=H, m=m))

    def __call__(self, state):
        state = jnp.asarray(state, jnp.float32)
        squeeze = state.ndim == 1
        if squeeze:
            state = state[None, :]
        B = state.shape[0]
        B_pad, _ = _batch_blocking(B)
        if B_pad != B:
            # Pad the batch only (feature dim stays at n); <8 wasted rows per block.
            state = jnp.pad(state, ((0, B_pad - B), (0, 0)))
        out = self._forward(state, self.params)
        if B_pad != B:
            out = out[:B]
        return out[0] if squeeze else out


# ------------------------- pure-JAX references (sanity) -------------------------

def _reference_forward_f32(actor, state):
    x = jnp.asarray(state, jnp.float32)
    for i in range(actor.H - 1):
        x = jnp.maximum(x @ actor.ref_weights[i] + actor.ref_biases[i], 0.0)
    y = x @ actor.ref_weights[-1] + actor.ref_biases[-1]
    return actor.ref_center + actor.ref_half * jnp.tanh(y)


def _reference_forward_bf16(actor, state):
    """Same math as the kernel: bf16 matmul inputs, f32 accumulation/epilogue."""
    x = jnp.asarray(state, jnp.float32)
    for i in range(actor.H - 1):
        w = actor.ref_weights[i].astype(jnp.bfloat16)
        x = jnp.maximum(
            jnp.dot(x.astype(jnp.bfloat16), w,
                    preferred_element_type=jnp.float32) + actor.ref_biases[i], 0.0)
    w = actor.ref_weights[-1].astype(jnp.bfloat16)
    y = jnp.dot(x.astype(jnp.bfloat16), w,
                preferred_element_type=jnp.float32) + actor.ref_biases[-1]
    return actor.ref_center + actor.ref_half * jnp.tanh(y)


if __name__ == "__main__":
    # BipedalWalker-ish sizes: state n=24, action m=4, hidden dim=32, H=3 layers.
    n, m, dim, H = 24, 4, 32, 3
    batch = 8
    action_max = [1.0, 1.0, 1.0, 1.0]
    action_min = [-1.0, -1.0, -1.0, -1.0]

    key = jax.random.PRNGKey(0)
    key, pkey, skey, skey2 = jax.random.split(key, 4)

    actor = Actor(n, m, dim, H, action_max, action_min, pkey)
    state = jax.random.normal(skey, (batch, n), dtype=jnp.float32)

    out = jax.block_until_ready(actor(state))
    ref16 = _reference_forward_bf16(actor, state)
    ref32 = _reference_forward_f32(actor, state)

    assert out.shape == (batch, m)
    assert bool(jnp.all(jnp.isfinite(out)))
    # Tight check vs. a reference with identical bf16-input / f32-accum math.
    assert jnp.allclose(out, ref16, atol=1e-2, rtol=1e-2)
    # Loose check vs. the pure-f32 reference (bf16 weight rounding only).
    assert jnp.allclose(out, ref32, atol=5e-2, rtol=5e-2)

    # Exercise the bucketed / batch-padded path (B=5 -> B_pad=8) and 1-D squeeze.
    state_odd = jax.random.normal(skey2, (5, n), dtype=jnp.float32)
    out_odd = jax.block_until_ready(actor(state_odd))
    assert out_odd.shape == (5, m)
    assert jnp.allclose(out_odd, _reference_forward_bf16(actor, state_odd),
                        atol=1e-2, rtol=1e-2)
    out_single = jax.block_until_ready(actor(state[0]))
    assert out_single.shape == (m,)
    assert jnp.allclose(out_single, out[0], atol=1e-5, rtol=1e-5)

    print("KERNEL_OK")
</pallas_src>

<mosaic_0001>
module attributes {stable_mosaic.version = 11 : i64} {
  func.func @kernel(%arg0: i32, %arg1: memref<8x24xf32, #tpu.memory_space<vmem>>, %arg2: memref<24x128xbf16, #tpu.memory_space<vmem>>, %arg3: memref<1x128xf32, #tpu.memory_space<vmem>>, %arg4: memref<1x128x128xbf16, #tpu.memory_space<vmem>>, %arg5: memref<1x1x128xf32, #tpu.memory_space<vmem>>, %arg6: memref<128x128xbf16, #tpu.memory_space<vmem>>, %arg7: memref<1x128xf32, #tpu.memory_space<vmem>>, %arg8: memref<1x128xf32, #tpu.memory_space<vmem>>, %arg9: memref<1x128xf32, #tpu.memory_space<vmem>>, %arg10: memref<8x128xf32, #tpu.memory_space<vmem>>) attributes {dimension_semantics = [#tpu.dimension_semantics<parallel>], iteration_bounds = array<i64: 1>, scalar_prefetch = 0 : i64, scratch_operands = 0 : i64, tpu.core_type = #tpu.core_type<tc>, window_params = [{transform_indices = @transform_0, window_bounds = array<i64: 8, 24>}, {pipeline_mode = #tpu.pipeline_mode<synchronous>, transform_indices = @transform_1, window_bounds = array<i64: 24, 128>}, {pipeline_mode = #tpu.pipeline_mode<synchronous>, transform_indices = @transform_2, window_bounds = array<i64: 1, 128>}, {pipeline_mode = #tpu.pipeline_mode<synchronous>, transform_indices = @transform_3, window_bounds = array<i64: 1, 128, 128>}, {pipeline_mode = #tpu.pipeline_mode<synchronous>, transform_indices = @transform_4, window_bounds = array<i64: 1, 1, 128>}, {pipeline_mode = #tpu.pipeline_mode<synchronous>, transform_indices = @transform_5, window_bounds = array<i64: 128, 128>}, {pipeline_mode = #tpu.pipeline_mode<synchronous>, transform_indices = @transform_6, window_bounds = array<i64: 1, 128>}, {pipeline_mode = #tpu.pipeline_mode<synchronous>, transform_indices = @transform_7, window_bounds = array<i64: 1, 128>}, {pipeline_mode = #tpu.pipeline_mode<synchronous>, transform_indices = @transform_8, window_bounds = array<i64: 1, 128>}, {transform_indices = @transform_9, window_bounds = array<i64: 8, 128>}]} {
    %c0 = arith.constant 0 : index
    %c0_0 = arith.constant 0 : index
    %0 = vector.load %arg1[%c0, %c0_0] : memref<8x24xf32, #tpu.memory_space<vmem>>, vector<8x24xf32>
    %1 = arith.truncf %0 : vector<8x24xf32> to vector<8x24xbf16>
    %c0_1 = arith.constant 0 : index
    %c0_2 = arith.constant 0 : index
    %2 = vector.load %arg2[%c0_1, %c0_2] : memref<24x128xbf16, #tpu.memory_space<vmem>>, vector<24x128xbf16>
    %cst = arith.constant dense<0.000000e+00> : vector<8x128xf32>
    %3 = tpu.matmul %1, %2, %cst {dimension_numbers = #tpu.dot_dimension_numbers<[1], [0], [0], [1], [0, 0, 1, 1], [], []>} : vector<8x24xbf16>, vector<24x128xbf16>, vector<8x128xf32> -> vector<8x128xf32>
    %c0_3 = arith.constant 0 : index
    %c0_4 = arith.constant 0 : index
    %4 = vector.load %arg3[%c0_3, %c0_4] : memref<1x128xf32, #tpu.memory_space<vmem>>, vector<1x128xf32>
    %5 = vector.broadcast %4 : vector<1x128xf32> to vector<8x128xf32>
    %6 = arith.addf %3, %5 : vector<8x128xf32>
    %cst_5 = arith.constant 0.000000e+00 : f32
    %7 = vector.broadcast %cst_5 : f32 to vector<8x128xf32>
    %8 = arith.maximumf %6, %7 : vector<8x128xf32>
    %9 = arith.truncf %8 : vector<8x128xf32> to vector<8x128xbf16>
    %c0_6 = arith.constant 0 : index
    %c0_7 = arith.constant 0 : index
    %c0_8 = arith.constant 0 : index
    %10 = vector.load %arg4[%c0_6, %c0_7, %c0_8] : memref<1x128x128xbf16, #tpu.memory_space<vmem>>, vector<1x128x128xbf16>
    %11 = vector.shape_cast %10 : vector<1x128x128xbf16> to vector<128x128xbf16>
    %cst_9 = arith.constant dense<0.000000e+00> : vector<8x128xf32>
    %12 = tpu.matmul %9, %11, %cst_9 {dimension_numbers = #tpu.dot_dimension_numbers<[1], [0], [0], [1], [0, 0, 1, 1], [], []>} : vector<8x128xbf16>, vector<128x128xbf16>, vector<8x128xf32> -> vector<8x128xf32>
    %c0_10 = arith.constant 0 : index
    %c0_11 = arith.constant 0 : index
    %c0_12 = arith.constant 0 : index
    %13 = vector.load %arg5[%c0_10, %c0_11, %c0_12] : memref<1x1x128xf32, #tpu.memory_space<vmem>>, vector<1x1x128xf32>
    %14 = vector.shape_cast %13 : vector<1x1x128xf32> to vector<1x128xf32>
    %15 = vector.broadcast %14 : vector<1x128xf32> to vector<8x128xf32>
    %16 = arith.addf %12, %15 : vector<8x128xf32>
    %cst_13 = arith.constant 0.000000e+00 : f32
    %17 = vector.broadcast %cst_13 : f32 to vector<8x128xf32>
    %18 = arith.maximumf %16, %17 : vector<8x128xf32>
    %19 = arith.truncf %18 : vector<8x128xf32> to vector<8x128xbf16>
    %c0_14 = arith.constant 0 : index
    %c0_15 = arith.constant 0 : index
    %20 = vector.load %arg6[%c0_14, %c0_15] : memref<128x128xbf16, #tpu.memory_space<vmem>>, vector<128x128xbf16>
    %cst_16 = arith.constant dense<0.000000e+00> : vector<8x128xf32>
    %21 = tpu.matmul %19, %20, %cst_16 {dimension_numbers = #tpu.dot_dimension_numbers<[1], [0], [0], [1], [0, 0, 1, 1], [], []>} : vector<8x128xbf16>, vector<128x128xbf16>, vector<8x128xf32> -> vector<8x128xf32>
    %c0_17 = arith.constant 0 : index
    %c0_18 = arith.constant 0 : index
    %22 = vector.load %arg7[%c0_17, %c0_18] : memref<1x128xf32, #tpu.memory_space<vmem>>, vector<1x128xf32>
    %23 = vector.broadcast %22 : vector<1x128xf32> to vector<8x128xf32>
    %24 = arith.addf %21, %23 : vector<8x128xf32>
    %c0_19 = arith.constant 0 : index
    %c0_20 = arith.constant 0 : index
    %25 = vector.load %arg8[%c0_19, %c0_20] : memref<1x128xf32, #tpu.memory_space<vmem>>, vector<1x128xf32>
    %c0_21 = arith.constant 0 : index
    %c0_22 = arith.constant 0 : index
    %26 = vector.load %arg9[%c0_21, %c0_22] : memref<1x128xf32, #tpu.memory_space<vmem>>, vector<1x128xf32>
    %27 = math.tanh %24 : vector<8x128xf32>
    %28 = vector.broadcast %26 : vector<1x128xf32> to vector<8x128xf32>
    %29 = arith.mulf %28, %27 : vector<8x128xf32>
    %30 = vector.broadcast %25 : vector<1x128xf32> to vector<8x128xf32>
    %31 = arith.addf %30, %29 : vector<8x128xf32>
    %c0_23 = arith.constant 0 : index
    %c0_24 = arith.constant 0 : index
    %32 = vector.load %arg10[%c0_23, %c0_24] : memref<8x128xf32, #tpu.memory_space<vmem>>, vector<8x128xf32>
    tpu.vector_store %arg10[%c0_23, %c0_24], %31 {strides = array<i32>} : memref<8x128xf32, #tpu.memory_space<vmem>>, vector<8x128xf32>,
    return
  }
  func.func @transform_0(%arg0: i32) -> (i32, i32) {
    %c0_i32 = arith.constant 0 : i32
    %c0_i32_0 = arith.constant 0 : i32
    return %arg0, %c0_i32 : i32, i32
  }
  func.func @transform_1(%arg0: i32) -> (i32, i32) {
    %c0_i32 = arith.constant 0 : i32
    %c0_i32_0 = arith.constant 0 : i32
    %c0_i32_1 = arith.constant 0 : i32
    return %c0_i32, %c0_i32_0 : i32, i32
  }
  func.func @transform_2(%arg0: i32) -> (i32, i32) {
    %c0_i32 = arith.constant 0 : i32
    %c0_i32_0 = arith.constant 0 : i32
    %c0_i32_1 = arith.constant 0 : i32
    return %c0_i32, %c0_i32_0 : i32, i32
  }
  func.func @transform_3(%arg0: i32) -> (i32, i32, i32) {
    %c0_i32 = arith.constant 0 : i32
    %c0_i32_0 = arith.constant 0 : i32
    %c0_i32_1 = arith.constant 0 : i32
    %c0_i32_2 = arith.constant 0 : i32
    return %c0_i32, %c0_i32_0, %c0_i32_1 : i32, i32, i32
  }
  func.func @transform_4(%arg0: i32) -> (i32, i32, i32) {
    %c0_i32 = arith.constant 0 : i32
    %c0_i32_0 = arith.constant 0 : i32
    %c0_i32_1 = arith.constant 0 : i32
    %c0_i32_2 = arith.constant 0 : i32
    return %c0_i32, %c0_i32_0, %c0_i32_1 : i32, i32, i32
  }
  func.func @transform_5(%arg0: i32) -> (i32, i32) {
    %c0_i32 = arith.constant 0 : i32
    %c0_i32_0 = arith.constant 0 : i32
    %c0_i32_1 = arith.constant 0 : i32
    return %c0_i32, %c0_i32_0 : i32, i32
  }
  func.func @transform_6(%arg0: i32) -> (i32, i32) {
    %c0_i32 = arith.constant 0 : i32
    %c0_i32_0 = arith.constant 0 : i32
    %c0_i32_1 = arith.constant 0 : i32
    return %c0_i32, %c0_i32_0 : i32, i32
  }
  func.func @transform_7(%arg0: i32) -> (i32, i32) {
    %c0_i32 = arith.constant 0 : i32
    %c0_i32_0 = arith.constant 0 : i32
    %c0_i32_1 = arith.constant 0 : i32
    return %c0_i32, %c0_i32_0 : i32, i32
  }
  func.func @transform_8(%arg0: i32) -> (i32, i32) {
    %c0_i32 = arith.constant 0 : i32
    %c0_i32_0 = arith.constant 0 : i32
    %c0_i32_1 = arith.constant 0 : i32
    return %c0_i32, %c0_i32_0 : i32, i32
  }
  func.func @transform_9(%arg0: i32) -> (i32, i32) {
    %c0_i32 = arith.constant 0 : i32
    %c0_i32_0 = arith.constant 0 : i32
    return %arg0, %c0_i32 : i32, i32
  }
}

</mosaic_0001>

<llo_original>
// kernel: _padded_forward.1
$region0: #{_padded_forward.1}
  #allocation0 [shape = 'u32[]', space=smem, size = 0x4, offset = 0x4, fixed_abs, tag = 'smem constant byte address 0x4 - core index']
  #allocation1 [shape = 'u32[144,128]{1,0:T(1,128)}', space=vmem, size = 0x12000, scoped, tag = 'internal scratch']
  %s0 = inlined_call_operand.hbm [shape: f32[8,24], index: 0, kind: input, shape index: {}]
  %s1 = inlined_call_operand.hbm [shape: bf16[24,128], index: 1, kind: input, shape index: {}]
  %s2 = inlined_call_operand.vmem [shape: f32[1,128], index: 2, kind: input, shape index: {}]
  %s3 = inlined_call_operand.hbm [shape: bf16[1,128,128], index: 3, kind: input, shape index: {}]
  %s4 = inlined_call_operand.vmem [shape: f32[1,1,128], index: 4, kind: input, shape index: {}]
  %s5 = inlined_call_operand.hbm [shape: bf16[128,128], index: 5, kind: input, shape index: {}]
  %s6 = inlined_call_operand.vmem [shape: f32[1,128], index: 6, kind: input, shape index: {}]
  %s7 = inlined_call_operand.vmem [shape: f32[1,128], index: 7, kind: input, shape index: {}]
  %s8 = inlined_call_operand.vmem [shape: f32[1,128], index: 8, kind: input, shape index: {}]
  %s9 = inlined_call_operand.vmem [shape: f32[8,128], index: 9, kind: output, shape index: {}]
  %s10 = sld [smem:[#allocation0]]
  $region62: #{_padded_forward.1} parent=0
    _
  %s12 = ssub.s32 1, %s10
  %s13 = scalar_select 0, %s12, %s10
  $region1: #{_padded_forward.1} parent=0
    #allocation2 [shape = 'u8[4096]{0}', space=vmem, size = 0x1000, scoped, tag = 'input window, operand 0, single buffered']
    #allocation3 [shape = 's32[1]{0}', space=sflag, size = 0x4, scoped, tag = 'scoped memory for _padded_forward.1']
    #allocation4 [shape = 'u8[6144]{0}', space=vmem, size = 0x1800, scoped, tag = 'input window, operand 1, single buffered']
    #allocation5 [shape = 's32[1]{0}', space=sflag, size = 0x4, scoped, tag = 'scoped memory for _padded_forward.1']
    #allocation6 [shape = 'u8[32768]{0}', space=vmem, size = 0x8000, scoped, tag = 'input window, operand 3, single buffered']
    #allocation7 [shape = 'u8[32768]{0}', space=vmem, size = 0x8000, scoped, tag = 'input window, operand 5, single buffered']
    #allocation8 [shape = 's32[1]{0}', space=sflag, size = 0x4, scoped, tag = 'scoped memory for _padded_forward.1']
    %14 = vsyncpa [#allocation3], 0
    %15 = vsyncpa [#allocation5], 0
    %16 = vsyncpa [#allocation8], 0
    // Predicated region
    $region2: #{_padded_forward.1} parent=1 // pred_check
      _
    $region3: #{_padded_forward.1} parent=1 // pred_check_branch
      %18 = sbr.rel (0) target = $region5
    $region4: #{_padded_forward.1} parent=1 // pred_region
      %s20 = ssub.s32 128, 128
      %21 = vsyncadd [#allocation3], %s20
      %s23 = sshll.u32 [#allocation2], 4
      %s24 = int_to_ptr.vmem [resolvable:$true] %s23
      %26 = dma.hbm_to_vmem [thread:$0]  %s0, 128, %s24, [#allocation3]
    $region5: #{_padded_forward.1} parent=1 // pred_fallthru
      _
    // Predicated region
    $region6: #{_padded_forward.1} parent=1 // pred_check
      _
    $region7: #{_padded_forward.1} parent=1 // pred_check_branch
      %28 = sbr.rel (0) target = $region9
    $region8: #{_padded_forward.1} parent=1 // pred_region
      %s30 = ssub.s32 192, 192
      %31 = vsyncadd [#allocation5], %s30
      %s32 = sshll.u32 [#allocation4], 4
      %s33 = int_to_ptr.vmem [resolvable:$true] %s32
      %38 = dma.hbm_to_vmem [thread:$0]  %s1, 192, %s33, [#allocation5], 64, 64, 4
    $region9: #{_padded_forward.1} parent=1 // pred_fallthru
      _
    // Predicated region
    $region10: #{_padded_forward.1} parent=1 // pred_check
      _
    $region11: #{_padded_forward.1} parent=1 // pred_check_branch
      %40 = sbr.rel (0) target = $region13
    $region12: #{_padded_forward.1} parent=1 // pred_region
      _
    $region13: #{_padded_forward.1} parent=1 // pred_fallthru
      _
    // Predicated region
    $region14: #{_padded_forward.1} parent=1 // pred_check
      _
    $region15: #{_padded_forward.1} parent=1 // pred_check_branch
      %42 = sbr.rel (0) target = $region17
    $region16: #{_padded_forward.1} parent=1 // pred_region
      %s44 = ssub.s32 1024, 1024
      %45 = vsyncadd [#allocation5], %s44
      %s46 = sshll.u32 [#allocation6], 4
      %s47 = int_to_ptr.vmem [resolvable:$true] %s46
      %52 = dma.hbm_to_vmem [thread:$0]  %s3, 1024, %s47, [#allocation5], 64, 64, 4
    $region17: #{_padded_forward.1} parent=1 // pred_fallthru
      _
    // Predicated region
    $region18: #{_padded_forward.1} parent=1 // pred_check
      _
    $region19: #{_padded_forward.1} parent=1 // pred_check_branch
      %54 = sbr.rel (0) target = $region21
    $region20: #{_padded_forward.1} parent=1 // pred_region
      _
    $region21: #{_padded_forward.1} parent=1 // pred_fallthru
      _
    // Predicated region
    $region22: #{_padded_forward.1} parent=1 // pred_check
      _
    $region23: #{_padded_forward.1} parent=1 // pred_check_branch
      %56 = sbr.rel (0) target = $region25
    $region24: #{_padded_forward.1} parent=1 // pred_region
      %s58 = ssub.s32 1024, 1024
      %59 = vsyncadd [#allocation8], %s58
      %s60 = sshll.u32 [#allocation7], 4
      %s61 = int_to_ptr.vmem [resolvable:$true] %s60
      %66 = dma.hbm_to_vmem [thread:$0]  %s5, 1024, %s61, [#allocation8], 64, 64, 4
    $region25: #{_padded_forward.1} parent=1 // pred_fallthru
      _
    // Predicated region
    $region26: #{_padded_forward.1} parent=1 // pred_check
      _
    $region27: #{_padded_forward.1} parent=1 // pred_check_branch
      %68 = sbr.rel (0) target = $region29
    $region28: #{_padded_forward.1} parent=1 // pred_region
      _
    $region29: #{_padded_forward.1} parent=1 // pred_fallthru
      _
    // Predicated region
    $region30: #{_padded_forward.1} parent=1 // pred_check
      _
    $region31: #{_padded_forward.1} parent=1 // pred_check_branch
      %70 = sbr.rel (0) target = $region33
    $region32: #{_padded_forward.1} parent=1 // pred_region
      _
    $region33: #{_padded_forward.1} parent=1 // pred_fallthru
      _
    // Predicated region
    $region34: #{_padded_forward.1} parent=1 // pred_check
      _
    $region35: #{_padded_forward.1} parent=1 // pred_check_branch
      %72 = sbr.rel (0) target = $region37
    $region36: #{_padded_forward.1} parent=1 // pred_region
      _
    $region37: #{_padded_forward.1} parent=1 // pred_fallthru
      _
    // Predicated region
    $region38: #{_padded_forward.1} parent=1 // pred_check
      _
    $region39: #{_padded_forward.1} parent=1 // pred_check_branch
      %74 = sbr.rel (0) target = $region41
    $region40: #{_padded_forward.1} parent=1 // pred_region
      %75 = dma.done [#allocation3], 128
    $region41: #{_padded_forward.1} parent=1 // pred_fallthru
      _
    // Predicated region
    $region42: #{_padded_forward.1} parent=1 // pred_check
      _
    $region43: #{_padded_forward.1} parent=1 // pred_check_branch
      %77 = sbr.rel (0) target = $region45
    $region44: #{_padded_forward.1} parent=1 // pred_region
      %78 = dma.done [#allocation5], 192
    $region45: #{_padded_forward.1} parent=1 // pred_fallthru
      _
    // Predicated region
    $region46: #{_padded_forward.1} parent=1 // pred_check
      _
    $region47: #{_padded_forward.1} parent=1 // pred_check_branch
      %80 = sbr.rel (0) target = $region49
    $region48: #{_padded_forward.1} parent=1 // pred_region
      %81 = dma.done [#allocation5], 1024
    $region49: #{_padded_forward.1} parent=1 // pred_fallthru
      _
    // Predicated region
    $region50: #{_padded_forward.1} parent=1 // pred_check
      _
    $region51: #{_padded_forward.1} parent=1 // pred_check_branch
      %83 = sbr.rel (0) target = $region53
    $region52: #{_padded_forward.1} parent=1 // pred_region
      %84 = dma.done [#allocation8], 1024
    $region53: #{_padded_forward.1} parent=1 // pred_fallthru
      _
    %v86 = vld [vmem:[#allocation2] sm:$0xff]
    %v87 = vpack.c.bf16 %v86, %v86
    %v88 = vld [vmem:[#allocation4] sm:$0xf]
    %v89 = vld [vmem:[#allocation4 + $0x4] sm:$0xf]
    %v90 = vld [vmem:[#allocation4 + $0x8] sm:$0xf]
    %v91 = vld [vmem:[%s2] sm:$0x1]
    %v93 = vlaneseq
    %v94 = vshrl.u32 %v93, 7
    %v95 = vsub.s32 0, %v94
    %v96 = vrot.slane %v91, %v95
    %v101 = vunpack.c.l.b16 %v88
    %v102 = vunpack.c.l.b16 %v89
    %v103 = vunpack.c.l.b16 %v90
    %v104 = vpack.c.b16 %v102, %v101
    %v105 = vpack.c.b16 %v103, %v103
    %vm107 = vcmask 195584
    %v109 = vsel %vm107, %v87, 0
    %vm111 = vcmask 1043456
    %v113 = vsel %vm111, %v105, 0
    %115 = vmatprep.subr.bf16.mxu0 0
    %116 = vmatpush1.bf16.msra.mxu0 %v104
    %117 = vmatprep.subr.bf16.mxu0 0
    %118 = vmatpush1.bf16.msra.mxu0 %v113
    %119 = vmatprep.subr.bf16.mxu0 0
    %120 = vmatpush1.bf16.msra.mxu0 0
    %121 = vmatprep.subr.bf16.mxu0 0
    %122 = vmatpush1.bf16.msra.mxu0 0
    %123 = vmatprep.subr.bf16.mxu0 0
    %124 = vmatpush1.bf16.msra.mxu0 0
    %125 = vmatprep.subr.bf16.mxu0 0
    %126 = vmatpush1.bf16.msra.mxu0 0
    %127 = vmatprep.subr.bf16.mxu0 0
    %128 = vmatpush1.bf16.msra.mxu0 0
    %129 = vmatprep.subr.bf16.mxu0 0
    %130 = vmatpush1.bf16.msra.mxu0 0
    %131 = vmatprep.subr.bf16.mxu0 0
    %132 = vmatpush1.bf16.msra.mxu0 0
    %133 = vmatprep.subr.bf16.mxu0 0
    %134 = vmatpush1.bf16.msra.mxu0 0
    %135 = vmatprep.subr.bf16.mxu0 0
    %136 = vmatpush1.bf16.msra.mxu0 0
    %137 = vmatprep.subr.bf16.mxu0 0
    %138 = vmatpush1.bf16.msra.mxu0 0
    %139 = vmatprep.subr.bf16.mxu0 0
    %140 = vmatpush1.bf16.msra.mxu0 0
    %141 = vmatprep.subr.bf16.mxu0 0
    %142 = vmatpush1.bf16.msra.mxu0 0
    %143 = vmatprep.subr.bf16.mxu0 0
    %144 = vmatpush1.bf16.msra.mxu0 0
    %145 = vmatprep.subr.bf16.mxu0 0
    %146 = vmatpush1.bf16.msra.mxu0 0
    %147 = vmatprep.mubr.bf16.mxu0 0
    %148 = vmatmul.mubr.bf16.gmra.mrb[0].mxu0 %v109
    %v149 = vpop.f32.mrb[0].mxu0
    %v150 = vadd.f32 %v96, %v149
    %v151 = vpop.f32.mrb[0].mxu0
    %v152 = vpop.f32.mrb[0].mxu0
    %v153 = vpop.f32.mrb[0].mxu0
    %154 = vdwg.mxu0
    %v155 = vmax.f32 %v150, 0.0
    %v156 = vpack.c.bf16 %v155, %v155
    %v157 = vld [vmem:[#allocation6] sm:$0xf]
    %v158 = vld [vmem:[#allocation6 + $0x4] sm:$0xf]
    %v159 = vld [vmem:[#allocation6 + $0x8] sm:$0xf]
    %v160 = vld [vmem:[#allocation6 + $0xc] sm:$0xf]
    %v161 = vld [vmem:[#allocation6 + $0x10] sm:$0xf]
    %v162 = vld [vmem:[#allocation6 + $0x14] sm:$0xf]
    %v163 = vld [vmem:[#allocation6 + $0x18] sm:$0xf]
    %v164 = vld [vmem:[#allocation6 + $0x1c] sm:$0xf]
    %v165 = vld [vmem:[#allocation6 + $0x20] sm:$0xf]
    %v166 = vld [vmem:[#allocation6 + $0x24] sm:$0xf]
    %v167 = vld [vmem:[#allocation6 + $0x28] sm:$0xf]
    %v168 = vld [vmem:[#allocation6 + $0x2c] sm:$0xf]
    %v169 = vld [vmem:[#allocation6 + $0x30] sm:$0xf]
    %v170 = vld [vmem:[#allocation6 + $0x34] sm:$0xf]
    %v171 = vld [vmem:[#allocation6 + $0x38] sm:$0xf]
    %v172 = vld [vmem:[#allocation6 + $0x3c] sm:$0xf]
    %v173 = vld [vmem:[%s4] sm:$0x1]
    %v175 = vlaneseq
    %v176 = vshrl.u32 %v175, 7
    %v177 = vsub.s32 0, %v176
    %v178 = vrot.slane %v173, %v177
    %v196 = vunpack.c.l.b16 %v157
    %v197 = vunpack.c.l.b16 %v158
    %v198 = vunpack.c.l.b16 %v159
    %v199 = vunpack.c.l.b16 %v160
    %v200 = vunpack.c.l.b16 %v161
    %v201 = vunpack.c.l.b16 %v162
    %v202 = vunpack.c.l.b16 %v163
    %v203 = vunpack.c.l.b16 %v164
    %v204 = vunpack.c.l.b16 %v165
    %v205 = vunpack.c.l.b16 %v166
    %v206 = vunpack.c.l.b16 %v167
    %v207 = vunpack.c.l.b16 %v168
    %v208 = vunpack.c.l.b16 %v169
    %v209 = vunpack.c.l.b16 %v170
    %v210 = vunpack.c.l.b16 %v171
    %v211 = vunpack.c.l.b16 %v172
    %v212 = vpack.c.b16 %v197, %v196
    %v213 = vpack.c.b16 %v199, %v198
    %v214 = vpack.c.b16 %v201, %v200
    %v215 = vpack.c.b16 %v203, %v202
    %v216 = vpack.c.b16 %v205, %v204
    %v217 = vpack.c.b16 %v207, %v206
    %v218 = vpack.c.b16 %v209, %v208
    %v219 = vpack.c.b16 %v211, %v210
    %228 = vmatprep.subr.bf16.mxu0 0
    %229 = vmatpush1.bf16.msra.mxu0 %v212
    %230 = vmatprep.subr.bf16.mxu0 0
    %231 = vmatpush1.bf16.msra.mxu0 %v213
    %232 = vmatprep.subr.bf16.mxu0 0
    %233 = vmatpush1.bf16.msra.mxu0 %v214
    %234 = vmatprep.subr.bf16.mxu0 0
    %235 = vmatpush1.bf16.msra.mxu0 %v215
    %236 = vmatprep.subr.bf16.mxu0 0
    %237 = vmatpush1.bf16.msra.mxu0 %v216
    %238 = vmatprep.subr.bf16.mxu0 0
    %239 = vmatpush1.bf16.msra.mxu0 %v217
    %240 = vmatprep.subr.bf16.mxu0 0
    %241 = vmatpush1.bf16.msra.mxu0 %v218
    %242 = vmatprep.subr.bf16.mxu0 0
    %243 = vmatpush1.bf16.msra.mxu0 %v219
    %244 = vmatprep.subr.bf16.mxu0 0
    %245 = vmatpush1.bf16.msra.mxu0 0
    %246 = vmatprep.subr.bf16.mxu0 0
    %247 = vmatpush1.bf16.msra.mxu0 0
    %248 = vmatprep.subr.bf16.mxu0 0
    %249 = vmatpush1.bf16.msra.mxu0 0
    %250 = vmatprep.subr.bf16.mxu0 0
    %251 = vmatpush1.bf16.msra.mxu0 0
    %252 = vmatprep.subr.bf16.mxu0 0
    %253 = vmatpush1.bf16.msra.mxu0 0
    %254 = vmatprep.subr.bf16.mxu0 0
    %255 = vmatpush1.bf16.msra.mxu0 0
    %256 = vmatprep.subr.bf16.mxu0 0
    %257 = vmatpush1.bf16.msra.mxu0 0
    %258 = vmatprep.subr.bf16.mxu0 0
    %259 = vmatpush1.bf16.msra.mxu0 0
    %260 = vmatprep.mubr.bf16.mxu0 0
    %261 = vmatmul.mubr.bf16.gmra.mrb[0].mxu0 %v156
    %v262 = vpop.f32.mrb[0].mxu0
    %v263 = vadd.f32 %v178, %v262
    %v264 = vpop.f32.mrb[0].mxu0
    %v265 = vpop.f32.mrb[0].mxu0
    %v266 = vpop.f32.mrb[0].mxu0
    %267 = vdwg.mxu0
    %v268 = vmax.f32 %v263, 0.0
    %v269 = vpack.c.bf16 %v268, %v268
    %v270 = vld [vmem:[#allocation7] sm:$0xf]
    %v271 = vld [vmem:[#allocation7 + $0x4] sm:$0xf]
    %v272 = vld [vmem:[#allocation7 + $0x8] sm:$0xf]
    %v273 = vld [vmem:[#allocation7 + $0xc] sm:$0xf]
    %v274 = vld [vmem:[#allocation7 + $0x10] sm:$0xf]
    %v275 = vld [vmem:[#allocation7 + $0x14] sm:$0xf]
    %v276 = vld [vmem:[#allocation7 + $0x18] sm:$0xf]
    %v277 = vld [vmem:[#allocation7 + $0x1c] sm:$0xf]
    %v278 = vld [vmem:[#allocation7 + $0x20] sm:$0xf]
    %v279 = vld [vmem:[#allocation7 + $0x24] sm:$0xf]
    %v280 = vld [vmem:[#allocation7 + $0x28] sm:$0xf]
    %v281 = vld [vmem:[#allocation7 + $0x2c] sm:$0xf]
    %v282 = vld [vmem:[#allocation7 + $0x30] sm:$0xf]
    %v283 = vld [vmem:[#allocation7 + $0x34] sm:$0xf]
    %v284 = vld [vmem:[#allocation7 + $0x38] sm:$0xf]
    %v285 = vld [vmem:[#allocation7 + $0x3c] sm:$0xf]
    %v286 = vld [vmem:[%s6] sm:$0x1]
    %v288 = vlaneseq
    %v289 = vshrl.u32 %v288, 7
    %v290 = vsub.s32 0, %v289
    %v291 = vrot.slane %v286, %v290
    %v309 = vunpack.c.l.b16 %v270
    %v310 = vunpack.c.l.b16 %v271
    %v311 = vunpack.c.l.b16 %v272
    %v312 = vunpack.c.l.b16 %v273
    %v313 = vunpack.c.l.b16 %v274
    %v314 = vunpack.c.l.b16 %v275
    %v315 = vunpack.c.l.b16 %v276
    %v316 = vunpack.c.l.b16 %v277
    %v317 = vunpack.c.l.b16 %v278
    %v318 = vunpack.c.l.b16 %v279
    %v319 = vunpack.c.l.b16 %v280
    %v320 = vunpack.c.l.b16 %v281
    %v321 = vunpack.c.l.b16 %v282
    %v322 = vunpack.c.l.b16 %v283
    %v323 = vunpack.c.l.b16 %v284
    %v324 = vunpack.c.l.b16 %v285
    %v325 = vpack.c.b16 %v310, %v309
    %v326 = vpack.c.b16 %v312, %v311
    %v327 = vpack.c.b16 %v314, %v313
    %v328 = vpack.c.b16 %v316, %v315
    %v329 = vpack.c.b16 %v318, %v317
    %v330 = vpack.c.b16 %v320, %v319
    %v331 = vpack.c.b16 %v322, %v321
    %v332 = vpack.c.b16 %v324, %v323
    %341 = vmatprep.subr.bf16.mxu0 0
    %342 = vmatpush1.bf16.msra.mxu0 %v325
    %343 = vmatprep.subr.bf16.mxu0 0
    %344 = vmatpush1.bf16.msra.mxu0 %v326
    %345 = vmatprep.subr.bf16.mxu0 0
    %346 = vmatpush1.bf16.msra.mxu0 %v327
    %347 = vmatprep.subr.bf16.mxu0 0
    %348 = vmatpush1.bf16.msra.mxu0 %v328
    %349 = vmatprep.subr.bf16.mxu0 0
    %350 = vmatpush1.bf16.msra.mxu0 %v329
    %351 = vmatprep.subr.bf16.mxu0 0
    %352 = vmatpush1.bf16.msra.mxu0 %v330
    %353 = vmatprep.subr.bf16.mxu0 0
    %354 = vmatpush1.bf16.msra.mxu0 %v331
    %355 = vmatprep.subr.bf16.mxu0 0
    %356 = vmatpush1.bf16.msra.mxu0 %v332
    %357 = vmatprep.subr.bf16.mxu0 0
    %358 = vmatpush1.bf16.msra.mxu0 0
    %359 = vmatprep.subr.bf16.mxu0 0
    %360 = vmatpush1.bf16.msra.mxu0 0
    %361 = vmatprep.subr.bf16.mxu0 0
    %362 = vmatpush1.bf16.msra.mxu0 0
    %363 = vmatprep.subr.bf16.mxu0 0
    %364 = vmatpush1.bf16.msra.mxu0 0
    %365 = vmatprep.subr.bf16.mxu0 0
    %366 = vmatpush1.bf16.msra.mxu0 0
    %367 = vmatprep.subr.bf16.mxu0 0
    %368 = vmatpush1.bf16.msra.mxu0 0
    %369 = vmatprep.subr.bf16.mxu0 0
    %370 = vmatpush1.bf16.msra.mxu0 0
    %371 = vmatprep.subr.bf16.mxu0 0
    %372 = vmatpush1.bf16.msra.mxu0 0
    %373 = vmatprep.mubr.bf16.mxu0 0
    %374 = vmatmul.mubr.bf16.gmra.mrb[0].mxu0 %v269
    %v375 = vpop.f32.mrb[0].mxu0
    %v376 = vadd.f32 %v291, %v375
    %v377 = vpop.f32.mrb[0].mxu0
    %v378 = vpop.f32.mrb[0].mxu0
    %v379 = vpop.f32.mrb[0].mxu0
    %380 = vdwg.mxu0
    %v381 = vld [vmem:[%s7] sm:$0x1]
    %v382 = vld [vmem:[%s8] sm:$0x1]
    %v383 = vtanh.pop %v376
    %v385 = vlaneseq
    %v386 = vshrl.u32 %v385, 7
    %v387 = vsub.s32 0, %v386
    %v388 = vrot.slane %v382, %v387
    %v390 = vmul.f32 %v388, %v383
    %v392 = vlaneseq
    %v393 = vshrl.u32 %v392, 7
    %v394 = vsub.s32 0, %v393
    %v395 = vrot.slane %v381, %v394
    %v397 = vadd.f32 %v395, %v390
    %398 = vst [vmem:[%s9] sm:$0xff] %v397
    // Predicated region
    $region54: #{_padded_forward.1} parent=1 // pred_check
      _
    $region55: #{_padded_forward.1} parent=1 // pred_check_branch
      %400 = sbr.rel (0) target = $region57
    $region56: #{_padded_forward.1} parent=1 // pred_region
      _
    $region57: #{_padded_forward.1} parent=1 // pred_fallthru
      _
    // Predicated region
    $region58: #{_padded_forward.1} parent=1 // pred_check
      _
    $region59: #{_padded_forward.1} parent=1 // pred_check_branch
      %402 = sbr.rel (0) target = $region61
    $region60: #{_padded_forward.1} parent=1 // pred_region
      _
    $region61: #{_padded_forward.1} parent=1 // pred_fallthru
      _
    %403 = vsyncpa [#allocation3], 1
    %404 = vsyncpa [#allocation5], 1
    %405 = vsyncpa [#allocation8], 1

</llo_original>
